<compile_context>
chip_gen: v5e
topology: v5e:2x2
jax: 0.10.0
libtpu: 0.0.40
codegen_flags: <defaults>
</compile_context>

<pallas_src>
import functools

import jax
import jax.numpy as jnp
from jax import lax
from jax.experimental import pallas as pl
from jax.experimental.pallas import tpu as pltpu

# torch.finfo(torch.get_default_dtype()).eps  (default dtype = float32)
EPS = float(jnp.finfo(jnp.float32).eps)

_MIB = 1024 * 1024
# Below this per-sample size, splitting a single sample across TensorCores is
# not worth the extra pass of HBM traffic / per-step overhead.
_SPLIT_MIN_BYTES = 4 * _MIB


# ---------------------------------------------------------------------------
# Hardware introspection (generation-aware VMEM budget)
# ---------------------------------------------------------------------------
@functools.lru_cache(maxsize=1)
def _tpu_memory_budget():
    """Returns (vmem_limit_cap_bytes, tensorcores_per_chip)."""
    vmem_cap = None
    try:
        vmem_cap = int(pltpu.get_tpu_info().vmem_capacity_bytes)
    except Exception:
        vmem_cap = None
    kind = ""
    try:
        kind = jax.devices()[0].device_kind.lower()
    except Exception:
        kind = ""
    is_v7 = "v7" in kind
    if vmem_cap is None:
        # v7x: 64 MiB / TC; v4/v5e/v6e: 128 MiB.  Unknown -> be conservative.
        vmem_cap = (64 * _MIB) if (is_v7 or not kind) else (128 * _MIB)
    n_cores = 2 if is_v7 else 1
    # Leave ~8 MiB runtime headroom for Mosaic's own scratch; never request
    # more than ~112 MiB even on 128 MiB parts.
    cap = int(min(max(vmem_cap - 8 * _MIB, 16 * _MIB), 112 * _MIB))
    return cap, n_cores


def _sublane_unit(dtype):
    """Sublane tiling unit: 8 rows for 32-bit, 16 for 16-bit, 32 for 8-bit."""
    return 8 * max(1, 4 // jnp.dtype(dtype).itemsize)


def _tile_target_bytes(vmem_cap):
    """Bigger tiles amortize the ~0.35us/step overhead; smaller on v7x."""
    return 4 * _MIB if vmem_cap <= 64 * _MIB else 6 * _MIB


def _pick_tile(total, unit, other_dim, itemsize, target_bytes):
    """Largest divisor of `total` that is a multiple of `unit` and keeps one
    (other_dim x tile) block near the target tile byte budget."""
    if total % unit != 0:
        return None
    max_elems = max(unit, target_bytes // max(1, other_dim * itemsize))
    max_tile = max(unit, (max_elems // unit) * unit)
    best = None
    t = unit
    while t <= min(total, max_tile):
        if total % t == 0:
            best = t
        t += unit
    return best


# ---------------------------------------------------------------------------
# Kernels (all statistics / normalization math in f32)
# ---------------------------------------------------------------------------
def _gln_resident_kernel(y_ref, gamma_ref, beta_ref, o_ref):
    """One full sample resident in VMEM: fused stats + normalize."""
    yf = y_ref[...].astype(jnp.float32)
    inv_n = jnp.float32(1.0 / (y_ref.shape[1] * y_ref.shape[2]))

    s = jnp.sum(yf)
    ss = jnp.sum(yf * yf)
    mean = s * inv_n
    # Clamp guards f32 cancellation in E[y^2] - mean^2 for large-mean data.
    var = jnp.maximum(ss * inv_n - mean * mean, 0.0)
    inv_std = lax.rsqrt(var + EPS)                    # EUP rsqrt, no VPU divide

    scale = gamma_ref[...].astype(jnp.float32) * inv_std
    shift = beta_ref[...].astype(jnp.float32) - mean * scale
    o_ref[...] = (yf * scale + shift).astype(o_ref.dtype)


def _gln_stats_kernel(y_ref, sum_ref, sq_ref):
    """Tiled pass 1 (fully parallel): per-(sample, tile) partial sums."""
    yf = y_ref[...].astype(jnp.float32)
    s = jnp.sum(yf)
    ss = jnp.sum(yf * yf)
    sum_ref[...] = jnp.full(sum_ref.shape, s, jnp.float32)
    sq_ref[...] = jnp.full(sq_ref.shape, ss, jnp.float32)


def _gln_apply_kernel(y_ref, gamma_ref, beta_ref, mean_ref, istd_ref, o_ref):
    """Tiled pass 2: fold gamma/beta with per-sample mean/inv_std in-kernel."""
    mean = mean_ref[0, 0, 0]
    inv_std = istd_ref[0, 0, 0]
    yf = y_ref[...].astype(jnp.float32)
    scale = gamma_ref[...].astype(jnp.float32) * inv_std
    shift = beta_ref[...].astype(jnp.float32) - mean * scale
    o_ref[...] = (yf * scale + shift).astype(o_ref.dtype)


# ---------------------------------------------------------------------------
# Pallas-call wrappers
# ---------------------------------------------------------------------------
def _gln_resident(y_v, gamma_b, beta_b, vmem_cap, vmem_est):
    M, D0, D1 = y_v.shape
    vmem_limit = int(min(max(vmem_est, 32 * _MIB), vmem_cap))
    return pl.pallas_call(
        _gln_resident_kernel,
        out_shape=jax.ShapeDtypeStruct((M, D0, D1), y_v.dtype),
        grid_spec=pltpu.PrefetchScalarGridSpec(
            num_scalar_prefetch=0,
            grid=(M,),
            in_specs=[
                pl.BlockSpec((1, D0, D1), lambda m: (m, 0, 0)),
                pl.BlockSpec(tuple(gamma_b.shape), lambda m: (0, 0, 0)),
                pl.BlockSpec(tuple(beta_b.shape), lambda m: (0, 0, 0)),
            ],
            out_specs=pl.BlockSpec((1, D0, D1), lambda m: (m, 0, 0)),
        ),
        compiler_params=pltpu.CompilerParams(
            dimension_semantics=("parallel",),
            vmem_limit_bytes=vmem_limit,
        ),
    )(y_v, gamma_b, beta_b)


def _gln_tiled(y_v, gamma_b, beta_b, tiled_axis, t, vmem_cap):
    M, D0, D1 = y_v.shape
    n_elems = D0 * D1
    itemsize = y_v.dtype.itemsize
    if tiled_axis == 2:                          # BDT: tile the lane (K) axis
        nk = D1 // t
        y_block = (1, D0, t)
        y_index = lambda m, k: (m, 0, k)
        other = D0
    else:                                        # BTD(-flat): tile sublane axis
        nk = D0 // t
        y_block = (1, t, D1)
        y_index = lambda m, k: (m, k, 0)
        other = D1

    t_io = other * t * itemsize
    t_f32 = other * t * 4

    # ---- pass 1: per-(sample, tile) partial sums, both grid axes parallel ---
    stats_shape = jax.ShapeDtypeStruct((M, nk, 1, 128), jnp.float32)
    stats_spec = pl.BlockSpec((1, 1, 1, 128), lambda m, k: (m, k, 0, 0))
    vmem1 = int(min(max(2 * t_io + 3 * t_f32 + 4 * _MIB, 32 * _MIB), vmem_cap))
    s_part, ss_part = pl.pallas_call(
        _gln_stats_kernel,
        out_shape=(stats_shape, stats_shape),
        grid_spec=pltpu.PrefetchScalarGridSpec(
            num_scalar_prefetch=0,
            grid=(M, nk),
            in_specs=[pl.BlockSpec(y_block, y_index)],
            out_specs=(stats_spec, stats_spec),
        ),
        compiler_params=pltpu.CompilerParams(
            dimension_semantics=("parallel", "parallel"),
            vmem_limit_bytes=vmem1,
        ),
    )(y_v)

    # Tiny XLA reduction to combine the per-tile partials.
    s = jnp.sum(s_part[:, :, 0, 0], axis=1)           # (M,)
    ss = jnp.sum(ss_part[:, :, 0, 0], axis=1)         # (M,)
    inv_n = jnp.float32(1.0 / n_elems)
    mean = s * inv_n
    var = jnp.maximum(ss * inv_n - mean * mean, 0.0)
    inv_std = lax.rsqrt(var + EPS)

    # Lane-dense per-sample scalars (M, 1, 128); folded with gamma/beta inside
    # the apply kernel -> no HBM-materialized (M, N, 1) scale/shift arrays.
    mean_arr = jnp.broadcast_to(mean.reshape(M, 1, 1), (M, 1, 128)).astype(jnp.float32)
    istd_arr = jnp.broadcast_to(inv_std.reshape(M, 1, 1), (M, 1, 128)).astype(jnp.float32)
    scal_spec = pl.BlockSpec((1, 1, 128), lambda m, k: (m, 0, 0))

    # ---- pass 2: elementwise normalize, both grid axes parallel -------------
    vmem2 = int(min(max(4 * t_io + 3 * t_f32 + 4 * _MIB, 32 * _MIB), vmem_cap))
    return pl.pallas_call(
        _gln_apply_kernel,
        out_shape=jax.ShapeDtypeStruct(y_v.shape, y_v.dtype),
        grid_spec=pltpu.PrefetchScalarGridSpec(
            num_scalar_prefetch=0,
            grid=(M, nk),
            in_specs=[
                pl.BlockSpec(y_block, y_index),
                pl.BlockSpec(tuple(gamma_b.shape), lambda m, k: (0, 0, 0)),
                pl.BlockSpec(tuple(beta_b.shape), lambda m, k: (0, 0, 0)),
                scal_spec,
                scal_spec,
            ],
            out_specs=pl.BlockSpec(y_block, y_index),
        ),
        compiler_params=pltpu.CompilerParams(
            dimension_semantics=("parallel", "parallel"),
            vmem_limit_bytes=vmem2,
        ),
    )(y_v, gamma_b, beta_b, mean_arr, istd_arr)


def _gln_jax_fallback(y_v, gamma_b, beta_b):
    yf = y_v.astype(jnp.float32)
    mean = jnp.mean(yf, axis=(1, 2), keepdims=True)
    var = jnp.mean(jnp.square(yf - mean), axis=(1, 2), keepdims=True)
    out = (gamma_b.astype(jnp.float32) * (yf - mean) * lax.rsqrt(var + EPS)
           + beta_b.astype(jnp.float32))
    return out.astype(y_v.dtype)


# ---------------------------------------------------------------------------
# Public entry point
# ---------------------------------------------------------------------------
def global_layer_norm(y, gamma, beta, shape="BDT", *,
                      resident_block_bytes=None, tile=None):
    """Pallas gLN matching look2hear GlobalLayerNorm.forward.

    Args:
        y: [M, N, K] if shape == 'BDT', else [M, K, N] ('BTD').
        gamma, beta: [1, channel_size, 1]  (channel_size == N).
        resident_block_bytes: override (in bytes of one sample) for the
            resident-vs-tiled dispatch; None -> VMEM-capacity-aware automatic.
        tile: optional explicit tile length along the canonical tiled axis
            (lane/K axis for 'BDT'; sublane/row axis for 'BTD').
    Returns:
        array with the same shape/dtype as y.
    """
    assert shape in ("BDT", "BTD")
    if shape == "BDT":
        M, N, K = y.shape
    else:
        M, K, N = y.shape
    assert gamma.shape == (1, N, 1) and beta.shape == (1, N, 1)

    vmem_cap, n_cores = _tpu_memory_budget()
    itemsize = y.dtype.itemsize

    # ---- canonicalize layout (no HBM transposes; reshapes are metadata-only)
    if shape == "BDT":
        y_v = y                                       # (M, N, K), lane axis = K
        gamma_b, beta_b = gamma, beta                 # (1, N, 1)
        tiled_axis, unit = 2, 128
    else:
        if N % 128 == 0:
            lane = N
        elif 128 % N == 0 and (K * N) % 128 == 0:
            lane = 128
        else:
            lane = None
        if lane is not None:
            # Lane-dense view: (M, K*N/lane, lane); gamma/beta become a
            # channel-periodic lane vector.
            reps = lane // N
            y_v = y.reshape(M, (K * N) // lane, lane)
            gamma_b = jnp.tile(gamma.reshape(1, 1, N), (1, 1, reps))
            beta_b = jnp.tile(beta.reshape(1, 1, N), (1, 1, reps))
        else:
            # TODO(synk): N neither divides nor is a multiple of 128 -> lanes
            # stay N-wide (masked partial stores); correctness preserved.
            y_v = y
            gamma_b = gamma.reshape(1, 1, N)
            beta_b = beta.reshape(1, 1, N)
        tiled_axis, unit = 1, _sublane_unit(y.dtype)

    _, D0, D1 = y_v.shape
    n_elems = D0 * D1
    io_bytes = n_elems * itemsize
    f32_bytes = n_elems * 4

    # ---- dispatch ------------------------------------------------------------
    # Resident path: 1 HBM read + 1 write per element (fused single pass).
    # Tiled path:    2 reads + 1 write (1.5x traffic) but fully shardable.
    # VMEM estimate: double-buffered I/O blocks + a few f32 temporaries.
    resident_est = 4 * io_bytes + 4 * f32_bytes + 2 * _MIB
    if resident_block_bytes is None:
        resident_ok = resident_est <= vmem_cap
    else:
        resident_ok = io_bytes <= resident_block_bytes

    total = y_v.shape[tiled_axis]
    other = y_v.shape[3 - tiled_axis]
    target = _tile_target_bytes(vmem_cap)
    t = tile if tile is not None else _pick_tile(total, unit, other, itemsize, target)
    tiled_ok = t is not None and total % t == 0 and t % unit == 0
    if tiled_ok:
        t_io = other * t * itemsize
        t_f32 = other * t * 4
        tiled_ok = (4 * t_io + 4 * t_f32 + 4 * _MIB) <= vmem_cap

    # Prefer the single-pass resident kernel (1.5x less HBM traffic), except
    # when the batch is too small to feed every TensorCore on this chip and
    # the sample is large enough for the fully-parallel tiled kernels to win.
    use_resident = resident_ok and not (
        tiled_ok and n_cores > 1 and M < n_cores and io_bytes >= _SPLIT_MIN_BYTES)

    if use_resident:
        out_v = _gln_resident(y_v, gamma_b, beta_b, vmem_cap, resident_est)
    elif tiled_ok:
        out_v = _gln_tiled(y_v, gamma_b, beta_b, tiled_axis, t, vmem_cap)
    else:
        # TODO(synk): sample too large for VMEM and no lane-/sublane-aligned
        # tile divides it -- plain XLA fallback rather than risking a
        # VMEM-overflowing resident block.
        out_v = _gln_jax_fallback(y_v, gamma_b, beta_b)

    return out_v.reshape(y.shape)


# ---------------------------------------------------------------------------
# Reference + self-test
# ---------------------------------------------------------------------------
def _reference_gln(y, gamma, beta, shape="BDT"):
    yf = y.astype(jnp.float32)
    if shape == "BTD":
        yf = jnp.transpose(yf, (0, 2, 1))
    mean = jnp.mean(yf, axis=(1, 2), keepdims=True)
    var = jnp.mean((yf - mean) ** 2, axis=(1, 2), keepdims=True)
    out = gamma * (yf - mean) / jnp.sqrt(var + EPS) + beta
    if shape == "BTD":
        out = jnp.transpose(out, (0, 2, 1))
    return out


if __name__ == "__main__":
    key = jax.random.PRNGKey(0)
    k0, k1, k2 = jax.random.split(key, 3)

    def check(y, gamma, beta, layout, atol, rtol, **kw):
        out = jax.block_until_ready(global_layer_norm(y, gamma, beta, layout, **kw))
        ref = _reference_gln(y, gamma, beta, layout)
        assert out.shape == y.shape and out.dtype == y.dtype
        out_f32 = out.astype(jnp.float32)
        err = float(jnp.max(jnp.abs(out_f32 - ref)))
        assert jnp.allclose(out_f32, ref, atol=atol, rtol=rtol), (
            f"mismatch for {layout} {y.shape} {y.dtype}: max abs err {err}")

    # Small shapes matching the module (batch=2, channels=4, length=16).
    # Module __init__: gamma filled with 1, beta zero, shape (1, channel, 1).
    M, N, K = 2, 4, 16
    y_bdt = jax.random.normal(k0, (M, N, K), dtype=jnp.float32)
    gamma = jnp.ones((1, N, 1), dtype=jnp.float32)
    beta = jnp.zeros((1, N, 1), dtype=jnp.float32)
    check(y_bdt, gamma, beta, "BDT", 5e-5, 5e-5)
    # BTD layout (handled in-kernel / by metadata reshapes, no HBM transposes).
    check(jnp.transpose(y_bdt, (0, 2, 1)), gamma, beta, "BTD", 5e-5, 5e-5)

    # Non-trivial gamma/beta with a non-zero data mean: resident + forced tiled.
    Nt, Kt = 8, 256
    y_big = jax.random.normal(k1, (M, Nt, Kt), dtype=jnp.float32) * 2.0 + 0.5
    gamma_t = jax.random.normal(k2, (1, Nt, 1), dtype=jnp.float32) * 0.1 + 1.0
    beta_t = jnp.full((1, Nt, 1), 0.25, dtype=jnp.float32)
    check(y_big, gamma_t, beta_t, "BDT", 5e-5, 5e-5)
    check(y_big, gamma_t, beta_t, "BDT", 5e-5, 5e-5,
          resident_block_bytes=0, tile=128)
    y_btd = jnp.transpose(y_big, (0, 2, 1))          # lane-dense flat-view path
    check(y_btd, gamma_t, beta_t, "BTD", 5e-5, 5e-5)
    check(y_btd, gamma_t, beta_t, "BTD", 5e-5, 5e-5,
          resident_block_bytes=0, tile=8)

    # bf16 I/O (stats and the final FMA stay in f32 inside the kernels).
    y_bf16 = y_big.astype(jnp.bfloat16)
    check(y_bf16, gamma_t, beta_t, "BDT", 5e-2, 5e-2)
    check(y_bf16, gamma_t, beta_t, "BDT", 5e-2, 5e-2,
          resident_block_bytes=0, tile=128)

    print("KERNEL_OK")
</pallas_src>

<mosaic_0001>
module attributes {stable_mosaic.version = 11 : i64} {
  func.func @_gln_resident_kernel(%arg0: i32, %arg1: memref<1x4x16xf32, #tpu.memory_space<vmem>>, %arg2: memref<1x4x1xf32, #tpu.memory_space<vmem>>, %arg3: memref<1x4x1xf32, #tpu.memory_space<vmem>>, %arg4: memref<1x4x16xf32, #tpu.memory_space<vmem>>) attributes {dimension_semantics = [#tpu.dimension_semantics<parallel>], iteration_bounds = array<i64: 2>, scalar_prefetch = 0 : i64, scratch_operands = 0 : i64, tpu.core_type = #tpu.core_type<tc>, window_params = [{transform_indices = @transform_0, window_bounds = array<i64: 1, 4, 16>}, {pipeline_mode = #tpu.pipeline_mode<synchronous>, transform_indices = @transform_1, window_bounds = array<i64: 1, 4, 1>}, {pipeline_mode = #tpu.pipeline_mode<synchronous>, transform_indices = @transform_2, window_bounds = array<i64: 1, 4, 1>}, {transform_indices = @transform_3, window_bounds = array<i64: 1, 4, 16>}]} {
    %c0 = arith.constant 0 : index
    %c0_0 = arith.constant 0 : index
    %c0_1 = arith.constant 0 : index
    %0 = vector.load %arg1[%c0, %c0_0, %c0_1] : memref<1x4x16xf32, #tpu.memory_space<vmem>>, vector<1x4x16xf32>
    %1 = vector.shape_cast %0 : vector<1x4x16xf32> to vector<1x1x4x16xf32>
    %cst = arith.constant dense<0.000000e+00> : vector<1xf32>
    %2 = vector.multi_reduction <add>, %1, %cst [1, 2, 3] : vector<1x1x4x16xf32> to vector<1xf32>
    %3 = vector.shape_cast %2 : vector<1xf32> to vector<1x1x1x1xf32>
    %4 = vector.extract %3[0, 0, 0, 0] : f32 from vector<1x1x1x1xf32>
    %5 = arith.mulf %0, %0 : vector<1x4x16xf32>
    %6 = vector.shape_cast %5 : vector<1x4x16xf32> to vector<1x1x4x16xf32>
    %cst_2 = arith.constant dense<0.000000e+00> : vector<1xf32>
    %7 = vector.multi_reduction <add>, %6, %cst_2 [1, 2, 3] : vector<1x1x4x16xf32> to vector<1xf32>
    %8 = vector.shape_cast %7 : vector<1xf32> to vector<1x1x1x1xf32>
    %9 = vector.extract %8[0, 0, 0, 0] : f32 from vector<1x1x1x1xf32>
    %cst_3 = arith.constant 1.562500e-02 : f32
    %10 = arith.mulf %4, %cst_3 : f32
    %cst_4 = arith.constant 1.562500e-02 : f32
    %11 = arith.mulf %9, %cst_4 : f32
    %12 = arith.mulf %10, %10 : f32
    %13 = arith.subf %11, %12 : f32
    %cst_5 = arith.constant 0.000000e+00 : f32
    %14 = arith.maximumf %13, %cst_5 : f32
    %cst_6 = arith.constant 1.1920929E-7 : f32
    %15 = arith.addf %14, %cst_6 : f32
    %16 = math.rsqrt %15 : f32
    %c0_7 = arith.constant 0 : index
    %c0_8 = arith.constant 0 : index
    %c0_9 = arith.constant 0 : index
    %17 = vector.load %arg2[%c0_7, %c0_8, %c0_9] : memref<1x4x1xf32, #tpu.memory_space<vmem>>, vector<1x4x1xf32>
    %18 = vector.broadcast %16 : f32 to vector<1x4x1xf32>
    %19 = arith.mulf %17, %18 : vector<1x4x1xf32>
    %c0_10 = arith.constant 0 : index
    %c0_11 = arith.constant 0 : index
    %c0_12 = arith.constant 0 : index
    %20 = vector.load %arg3[%c0_10, %c0_11, %c0_12] : memref<1x4x1xf32, #tpu.memory_space<vmem>>, vector<1x4x1xf32>
    %21 = vector.broadcast %10 : f32 to vector<1x4x1xf32>
    %22 = arith.mulf %21, %19 : vector<1x4x1xf32>
    %23 = arith.subf %20, %22 : vector<1x4x1xf32>
    %24 = vector.broadcast %19 : vector<1x4x1xf32> to vector<1x4x16xf32>
    %25 = arith.mulf %0, %24 : vector<1x4x16xf32>
    %26 = vector.broadcast %23 : vector<1x4x1xf32> to vector<1x4x16xf32>
    %27 = arith.addf %25, %26 : vector<1x4x16xf32>
    %c0_13 = arith.constant 0 : index
    %c0_14 = arith.constant 0 : index
    %c0_15 = arith.constant 0 : index
    %28 = vector.load %arg4[%c0_13, %c0_14, %c0_15] : memref<1x4x16xf32, #tpu.memory_space<vmem>>, vector<1x4x16xf32>
    tpu.vector_store %arg4[%c0_13, %c0_14, %c0_15], %27 {strides = array<i32>} : memref<1x4x16xf32, #tpu.memory_space<vmem>>, vector<1x4x16xf32>,
    return
  }
  func.func @transform_0(%arg0: i32) -> (i32, i32, i32) {
    %c0_i32 = arith.constant 0 : i32
    %c0_i32_0 = arith.constant 0 : i32
    %c0_i32_1 = arith.constant 0 : i32
    return %arg0, %c0_i32, %c0_i32_0 : i32, i32, i32
  }
  func.func @transform_1(%arg0: i32) -> (i32, i32, i32) {
    %c0_i32 = arith.constant 0 : i32
    %c0_i32_0 = arith.constant 0 : i32
    %c0_i32_1 = arith.constant 0 : i32
    %c0_i32_2 = arith.constant 0 : i32
    return %c0_i32, %c0_i32_0, %c0_i32_1 : i32, i32, i32
  }
  func.func @transform_2(%arg0: i32) -> (i32, i32, i32) {
    %c0_i32 = arith.constant 0 : i32
    %c0_i32_0 = arith.constant 0 : i32
    %c0_i32_1 = arith.constant 0 : i32
    %c0_i32_2 = arith.constant 0 : i32
    return %c0_i32, %c0_i32_0, %c0_i32_1 : i32, i32, i32
  }
  func.func @transform_3(%arg0: i32) -> (i32, i32, i32) {
    %c0_i32 = arith.constant 0 : i32
    %c0_i32_0 = arith.constant 0 : i32
    %c0_i32_1 = arith.constant 0 : i32
    return %arg0, %c0_i32, %c0_i32_0 : i32, i32, i32
  }
}

</mosaic_0001>

<llo_original>
// kernel: tpu_custom_call.1
$region0: #{tpu_custom_call.1}
  #allocation0 [shape = 'u32[]', space=smem, size = 0x4, offset = 0x4, fixed_abs, tag = 'smem constant byte address 0x4 - core index']
  #allocation1 [shape = 'u32[72,128]{1,0:T(1,128)}', space=vmem, size = 0x9000, scoped, tag = 'internal scratch']
  %s0 = inlined_call_operand.vmem [shape: f32[2,4,16], index: 0, kind: input, shape index: {}]
  %s1 = inlined_call_operand.vmem [shape: f32[1,4,1], index: 1, kind: input, shape index: {}]
  %s2 = inlined_call_operand.vmem [shape: f32[1,4,1], index: 2, kind: input, shape index: {}]
  %s3 = inlined_call_operand.hbm [shape: f32[2,4,16], index: 3, kind: output, shape index: {}]
  %s4 = sld [smem:[#allocation0]]
  $region45: #{tpu_custom_call.1} parent=0
    _
  %s6 = ssub.s32 1, %s4
  %s7 = scalar_select 0, %s6, %s4
  $region1: #{tpu_custom_call.1} parent=0
    #allocation2 [shape = 'u8[4096]{0}', space=vmem, size = 0x1000, scoped, tag = 'output window, operand 0']
    #allocation3 [shape = 's32[2]{0}', space=sflag, size = 0x8, scoped, tag = 'scoped memory for tpu_custom_call.1']
    %8 = vsyncpa [#allocation3], 0
    %s9 = scalar_lea.sflag [#allocation3], 1
    %10 = vsyncpa %s9, 0
    loop: start=0, step=1, limit=4
    $region2: #{tpu_custom_call.1} parent=1 // loop_pre_header
      _
    $region3: #{tpu_custom_call.1} parent=1 // loop_header
      %s12 = sphi 0, %s16
      %p13 = scmp.ge.s32.totalorder %s12, 4
      %s22 = sphi 0, %s24
      %s25 = sphi 0, %s22
      %s26 = sphi 0, %s25
      %s42 = sphi 0, %s26
      %s46 = sphi 0, %s46
      %s48 = sphi 0, %s46
      %s49 = sphi 0, %s48
      %s63 = sphi 0, %s49
      %s67 = sphi 0, %s67
      %s69 = sphi 0, %s67
      %s70 = sphi 0, %s69
      %s84 = sphi 0, %s70
      %s90 = sphi 0, %s92
      %s93 = sphi 0, %s90
      %s94 = sphi 0, %s93
      %s110 = sphi 0, %s94
    $region4: #{tpu_custom_call.1} parent=1 // loop_header_branch
      %15 = sbr.rel (%p13) target = $region8
    $region5: #{tpu_custom_call.1} parent=1 // loop_body
      %s17 = ssub.s32 %s12, 1
      %s18 = ssub.s32 %s12, 2
      %s19 = sadd.s32 %s12, 1
      %s20 = ssub.s32 %s12, %s19
      %p21 = scmp.eq.s32.totalorder %s20, 0
      %s23 = sadd.s32 %s22, 1
      %s24 = scalar_select %p21, %s22, %s23
      %p27 = pneg %p21
      %p28 = scmp.eq.s32.totalorder %s12, 1
      %p29 = por %p27, %p28
      %p30 = scmp.ne.s32.totalorder %s22, %s25
      %p31 = scmp.eq.s32.totalorder %s12, 0
      %p32 = por %p30, %p31
      %p33 = scmp.ne.s32.totalorder %s22, %s25
      %p34 = scmp.eq.s32.totalorder %s17, 1
      %p35 = por %p33, %p34
      %p36 = scmp.ne.s32.totalorder %s25, %s26
      %p37 = scmp.eq.s32.totalorder %s17, 0
      %p38 = por %p36, %p37
      %p39 = scmp.ne.s32.totalorder %s25, %s26
      %p40 = scmp.eq.s32.totalorder %s18, 1
      %p41 = por %p39, %p40
      %p43 = scmp.ne.s32.totalorder %s26, %s42
      %p44 = scmp.eq.s32.totalorder %s18, 0
      %p45 = por %p43, %p44
      %s47 = sadd.s32 %s46, 1
      %p50 = scmp.eq.s32.totalorder %s12, 1
      %p51 = scmp.ne.s32.totalorder %s46, %s48
      %p52 = scmp.eq.s32.totalorder %s12, 0
      %p53 = por %p51, %p52
      %p54 = scmp.ne.s32.totalorder %s46, %s48
      %p55 = scmp.eq.s32.totalorder %s17, 1
      %p56 = por %p54, %p55
      %p57 = scmp.ne.s32.totalorder %s48, %s49
      %p58 = scmp.eq.s32.totalorder %s17, 0
      %p59 = por %p57, %p58
      %p60 = scmp.ne.s32.totalorder %s48, %s49
      %p61 = scmp.eq.s32.totalorder %s18, 1
      %p62 = por %p60, %p61
      %p64 = scmp.ne.s32.totalorder %s49, %s63
      %p65 = scmp.eq.s32.totalorder %s18, 0
      %p66 = por %p64, %p65
      %s68 = sadd.s32 %s67, 1
      %p71 = scmp.eq.s32.totalorder %s12, 1
      %p72 = scmp.ne.s32.totalorder %s67, %s69
      %p73 = scmp.eq.s32.totalorder %s12, 0
      %p74 = por %p72, %p73
      %p75 = scmp.ne.s32.totalorder %s67, %s69
      %p76 = scmp.eq.s32.totalorder %s17, 1
      %p77 = por %p75, %p76
      %p78 = scmp.ne.s32.totalorder %s69, %s70
      %p79 = scmp.eq.s32.totalorder %s17, 0
      %p80 = por %p78, %p79
      %p81 = scmp.ne.s32.totalorder %s69, %s70
      %p82 = scmp.eq.s32.totalorder %s18, 1
      %p83 = por %p81, %p82
      %p85 = scmp.ne.s32.totalorder %s70, %s84
      %p86 = scmp.eq.s32.totalorder %s18, 0
      %p87 = por %p85, %p86
      %s88 = ssub.s32 %s12, %s19
      %p89 = scmp.eq.s32.totalorder %s88, 0
      %s91 = sadd.s32 %s90, 1
      %s92 = scalar_select %p89, %s90, %s91
      %p95 = pneg %p89
      %p96 = scmp.eq.s32.totalorder %s12, 1
      %p97 = por %p95, %p96
      %p98 = scmp.ne.s32.totalorder %s90, %s93
      %p99 = scmp.eq.s32.totalorder %s12, 0
      %p100 = por %p98, %p99
      %p101 = scmp.ne.s32.totalorder %s90, %s93
      %p102 = scmp.eq.s32.totalorder %s17, 1
      %p103 = por %p101, %p102
      %p104 = scmp.ne.s32.totalorder %s93, %s94
      %p105 = scmp.eq.s32.totalorder %s17, 0
      %p106 = por %p104, %p105
      %p107 = scmp.ne.s32.totalorder %s93, %s94
      %p108 = scmp.eq.s32.totalorder %s18, 1
      %p109 = por %p107, %p108
      %p111 = scmp.ne.s32.totalorder %s94, %s110
      %p112 = scmp.eq.s32.totalorder %s18, 0
      %p113 = por %p111, %p112
      %p114 = scmp.le.s32.totalorder 1, %s12
      %p115 = scmp.lt.s32.totalorder %s12, 3
      %p116 = pnand %p114, %p115
      %p117 = pneg %p116
      // Predicated region
      $region9: #{tpu_custom_call.1} parent=5 // pred_check
        _
      $region10: #{tpu_custom_call.1} parent=5 // pred_check_branch
        %119 = sbr.rel (%p116) target = $region12
      $region11: #{tpu_custom_call.1} parent=5 // pred_region
        %s120 = ssub.s32 %s12, 1
        // Predicated region
        $region13: #{tpu_custom_call.1} parent=11 // pred_check
          %p121 = pneg %p59
        $region14: #{tpu_custom_call.1} parent=11 // pred_check_branch
          %123 = sbr.rel (%p121) target = $region16
        $region15: #{tpu_custom_call.1} parent=11 // pred_region
          _
        $region16: #{tpu_custom_call.1} parent=11 // pred_fallthru
          _
        // Predicated region
        $region17: #{tpu_custom_call.1} parent=11 // pred_check
          %p124 = pneg %p80
        $region18: #{tpu_custom_call.1} parent=11 // pred_check_branch
          %126 = sbr.rel (%p124) target = $region20
        $region19: #{tpu_custom_call.1} parent=11 // pred_region
          _
        $region20: #{tpu_custom_call.1} parent=11 // pred_fallthru
          _
      $region12: #{tpu_custom_call.1} parent=5 // pred_fallthru
        _
      %p127 = scmp.lt.s32.totalorder %s12, 2
      // Predicated region
      $region21: #{tpu_custom_call.1} parent=5 // pred_check
        %p128 = pneg %p127
      $region22: #{tpu_custom_call.1} parent=5 // pred_check_branch
        %130 = sbr.rel (%p128) target = $region24
      $region23: #{tpu_custom_call.1} parent=5 // pred_region
        // Predicated region
        $region25: #{tpu_custom_call.1} parent=23 // pred_check
          %p131 = pneg %p32
        $region26: #{tpu_custom_call.1} parent=23 // pred_check_branch
          %133 = sbr.rel (%p131) target = $region28
        $region27: #{tpu_custom_call.1} parent=23 // pred_region
          %p134 = scmp.lt.s32.totalorder %s12, 1
          %s135 = scalar_select %p134, %s12, 1
          %s136 = smul.addr %s135, 4
          %s137 = scalar_lea.vmem %s0, %s136
        $region28: #{tpu_custom_call.1} parent=23 // pred_fallthru
          _
      $region24: #{tpu_custom_call.1} parent=5 // pred_fallthru
        _
      %p138 = scmp.le.s32.totalorder 1, %s12
      %p139 = scmp.lt.s32.totalorder %s12, 3
      %p140 = pnand %p138, %p139
      %p141 = pneg %p140
      // Predicated region
      $region29: #{tpu_custom_call.1} parent=5 // pred_check
        _
      $region30: #{tpu_custom_call.1} parent=5 // pred_check_branch
        %143 = sbr.rel (%p140) target = $region32
      $region31: #{tpu_custom_call.1} parent=5 // pred_region
        %s144 = ssub.s32 %s12, 1
        %p145 = scmp.lt.s32.totalorder %s17, 1
        %s146 = scalar_select %p145, %s17, 1
        %s147 = smul.addr %s146, 4
        %s148 = scalar_lea.vmem %s0, %s147
        %p149 = pneg %p38
        %p150 = pneg %p35
        %p151 = pneg %p59
        %p152 = pneg %p56
        %p153 = pneg %p80
        %p154 = pneg %p77
        %p155 = pneg %p106
        %p156 = pneg %p103
        %s157 = sand.u32 %s93, 1
        %s158 = scalar_lea.sflag [#allocation3], %s157
        %s159 = sand.u32 %s93, 1
        %s160 = smul.addr %s159, 4
        %s161 = scalar_lea.vmem [#allocation2], %s160
        %p162 = scmp.lt.s32.totalorder %s17, 1
        %s163 = scalar_select %p162, %s17, 1
        %s164 = smul.addr %s163, 4
        %s165 = scalar_lea.vmem %s0, %s164
        %v166 = vld [vmem:[%s165] sm:$0xf]
        %vm167 = vcmask 125952
        %v168 = vsel %vm167, %v166, 0.0
        %169 = vadd.xlane.f32.xlu0 %v168
        %v170 = vpop.xlane.xlu0 %169
        %v171 = vrot.slane %v170, 4
        %v172 = vadd.f32 %v170, %v171
        %v173 = vrot.slane %v172, 2
        %v174 = vadd.f32 %v172, %v173
        %v175 = vrot.slane %v174, 1
        %v176 = vadd.f32 %v174, %v175
        %s177 = vtos %v176
        %v178 = vmul.f32 %v166, %v166
        %v179 = vsel %vm167, %v178, 0.0
        %180 = vadd.xlane.f32.xlu0 %v179
        %v181 = vpop.xlane.xlu0 %180
        %v182 = vrot.slane %v181, 4
        %v183 = vadd.f32 %v181, %v182
        %v184 = vrot.slane %v183, 2
        %v185 = vadd.f32 %v183, %v184
        %v186 = vrot.slane %v185, 1
        %v187 = vadd.f32 %v185, %v186
        %s188 = vtos %v187
        %s189 = smul.f32 %s177, 0.015625
        %s190 = smul.f32 %s188, 0.015625
        %s191 = smul.f32 %s189, %s189
        %s192 = ssub.f32 %s190, %s191
        %s193 = smax.f32 %s192, 0.0
        %s194 = sadd.f32 %s193, 1.1920929e-07
        %v195 = vstv %s194
        %v196 = vrsqrt.pop %v195
        %v197 = vmul.f32 %v196, %v195
        %v198 = vmul.f32 %v197, %v196
        %v199 = vmul.f32 0.5, %v198
        %v200 = vsub.f32 1.5, %v199
        %v201 = vmul.f32 %v196, %v200
        %vm202 = vweird.f32 %v195
        %vm203 = vweird.f32 %v196
        %vm204 = vmor %vm202, %vm203
        %v205 = vsel %vm204, %v196, %v201
        %s206 = vtos %v205
        %v207 = vld [vmem:[%s1] sm:$0xf]
        %v208 = vstv %s206
        %v209 = vmul.f32 %v207, %v208
        %v210 = vld [vmem:[%s2] sm:$0xf]
        %v211 = vstv %s189
        %v212 = vmul.f32 %v211, %v209
        %v213 = vsub.f32 %v210, %v212
        %215 = vset.pattern.permute.xlu0 0
        %216 = vperm.xlu0 %215, %v209
        %v217 = vpop.permute.xlu0 %216
        %v219 = vmul.f32 %v166, %v217
        %221 = vset.pattern.permute.xlu0 0
        %222 = vperm.xlu0 %221, %v213
        %v223 = vpop.permute.xlu0 %222
        %v225 = vadd.f32 %v219, %v223
        %226 = vst.msk [vmem:[%s161] sm:$0xf] %vm167, %v225
        %s227 = sand.u32 %s93, 1
        %s228 = scalar_lea.sflag [#allocation3], %s227
        %s229 = sand.u32 %s93, 1
        %s230 = smul.addr %s229, 4
        %s231 = scalar_lea.vmem [#allocation2], %s230
        // Predicated region
        $region33: #{tpu_custom_call.1} parent=31 // pred_check
          %p232 = pneg %p103
        $region34: #{tpu_custom_call.1} parent=31 // pred_check_branch
          %234 = sbr.rel (%p232) target = $region36
        $region35: #{tpu_custom_call.1} parent=31 // pred_region
          %236 = vsyncadd %s228, 0
          %s237 = smul.addr %s17, 4
          %s238 = scalar_lea.hbm %s3, %s237
          %s240 = sshll.u32 %s231, 4
          %s241 = int_to_ptr.vmem [resolvable:$true] %s240
          %s242 = sshll.u32 %s238, 4
          %s243 = int_to_ptr.hbm [resolvable:$true] %s242
          %245 = dma.vmem_to_hbm [thread:$0]  %s241, 64, %s243, %s228
        $region36: #{tpu_custom_call.1} parent=31 // pred_fallthru
          _
      $region32: #{tpu_custom_call.1} parent=5 // pred_fallthru
        _
      %p246 = scmp.le.s32.totalorder 2, %s12
      // Predicated region
      $region37: #{tpu_custom_call.1} parent=5 // pred_check
        %p247 = pneg %p246
      $region38: #{tpu_custom_call.1} parent=5 // pred_check_branch
        %249 = sbr.rel (%p247) target = $region40
      $region39: #{tpu_custom_call.1} parent=5 // pred_region
        %s250 = ssub.s32 %s12, 2
        // Predicated region
        $region41: #{tpu_custom_call.1} parent=39 // pred_check
          %p251 = pneg %p109
        $region42: #{tpu_custom_call.1} parent=39 // pred_check_branch
          %253 = sbr.rel (%p251) target = $region44
        $region43: #{tpu_custom_call.1} parent=39 // pred_region
          %s254 = sand.u32 %s94, 1
          %s255 = scalar_lea.sflag [#allocation3], %s254
          %s256 = sand.u32 %s94, 1
          %s257 = smul.addr %s256, 4
          %s258 = scalar_lea.vmem [#allocation2], %s257
          %260 = dma.done %s255, 64
        $region44: #{tpu_custom_call.1} parent=39 // pred_fallthru
          _
      $region40: #{tpu_custom_call.1} parent=5 // pred_fallthru
        _
    $region6: #{tpu_custom_call.1} parent=1 // loop_footer
      %s16 = sadd.s32 1, %s12
    $region7: #{tpu_custom_call.1} parent=1 // loop_footer_branch
      %11 = sbr.rel target = $region3
    $region8: #{tpu_custom_call.1} parent=1 // loop_exit
      _
    %261 = vsyncpa [#allocation3], 1
    %s262 = scalar_lea.sflag [#allocation3], 1
    %263 = vsyncpa %s262, 1

</llo_original>
